<compile_context>
chip_gen: v6e
topology: v6e:2x2x1
jax: 0.10.0
libtpu: 0.0.40
codegen_flags: <defaults>
</compile_context>

<pallas_src>
import functools
import math

import numpy as np
import jax
import jax.numpy as jnp
from jax.experimental import pallas as pl
from jax.experimental.pallas import tpu as pltpu

E = 100      # sizeEmbLayer == sizeClassfLayer (module defaults)
EP = 128     # E padded to a full lane width
EPS = 1e-5   # BatchNorm1d eps


# ----------------------------- Pallas kernel ------------------------------- #
def ncc_kernel(xy_ref, wslab_ref, cslab_ref, out_ref, *, B, D):
    """Single-program NCC forward.

    xy_ref    : (B*D, EP) f32   cols 0,1 = (x, y); cols 2..127 zero
    wslab_ref : (6, EP, EP) bf16 [W1, W2, Wc0, Wc1, Wc2, Wc3] (zero-padded)
    cslab_ref : (5, R, EP) f32  [s1, t1, s2, t2, misc]
                misc rows 0-3 = deepclass fused biases, row 4 = logits weight
                row, row 5 = logits bias in lane 0 (zeros elsewhere)
    out_ref   : (B, 2)    f32   lane 0 = logits, lane 1 = sigmoid(logits)
    """
    BD = B * D

    def rep(block):  # (D, EP) -> (B*D, EP): row b*D + d uses block[d]
        return jnp.broadcast_to(block[None], (B, D, EP)).reshape(BD, EP)

    s1 = rep(cslab_ref[0][:D, :])
    t1 = rep(cslab_ref[1][:D, :])
    s2 = rep(cslab_ref[2][:D, :])
    t2 = rep(cslab_ref[3][:D, :])
    misc = cslab_ref[4]                                    # (R, EP) f32

    # ---- embedding path: Linear -> (view-reshaped) BatchNorm -> ReLU, x4 ----
    h = jnp.dot(xy_ref[...].astype(jnp.bfloat16), wslab_ref[0],
                preferred_element_type=jnp.float32)        # (B*D, EP)
    h = jnp.maximum(h * s1 + t1, 0.0)

    w2 = wslab_ref[1]                                      # (EP, EP) bf16
    for _ in range(3):   # e1Linear2 / e1BatchNorm2 reused (layers 2..4 -> e1D4)
        h = jnp.dot(h.astype(jnp.bfloat16), w2,
                    preferred_element_type=jnp.float32)
        h = jnp.maximum(h * s2 + t2, 0.0)

    # ---- finalEmbLayer = mean over DataSize: tile-aligned sublane reduce ----
    z = jnp.mean(h.reshape(B, D, EP), axis=1)              # (B, EP)

    # ---- deepclass applied twice: 4 fused (Linear+BN) + ReLU layers each ----
    for _ in range(2):
        for k in range(4):
            z = jnp.dot(z.astype(jnp.bfloat16), wslab_ref[2 + k],
                        preferred_element_type=jnp.float32)
            z = jnp.maximum(z + misc[k:k + 1, :], 0.0)

    # ---- logits head: (E->1) as VPU multiply + lane reduce; bias in lane 0 ----
    lg = jnp.sum(z * misc[4:5, :] + misc[5:6, :], axis=-1, keepdims=True)  # (B,1)
    out_ref[:, 0:1] = lg
    out_ref[:, 1:2] = jax.nn.sigmoid(lg)


# ------------------------ parameter packing (one-time) ---------------------- #
def pack_ncc_params(params, D):
    """Fold eval-mode BN, pad E->128, pack everything into two slabs."""
    R = max(D, 8)

    # BN channel seen by element (d, e) after the PyTorch .view(B, E, D) trick.
    chan = (np.arange(D * E) // D).reshape(D, E)

    def bn_affine_de(bn):
        g, beta, mu, var = bn
        scale = g / jnp.sqrt(var + EPS)
        shift = beta - mu * scale
        return scale[chan], shift[chan]                    # (D, E)

    def pad2(a, rows, cols):
        out = jnp.zeros((rows, cols), jnp.float32)
        return out.at[:a.shape[0], :a.shape[1]].set(a)

    W1, b1 = params["e1l1"]
    s1, t1 = bn_affine_de(params["e1bn1"])
    t1 = t1 + b1[None, :] * s1                             # fold Linear bias
    W2, b2 = params["e1l2"]
    s2, t2 = bn_affine_de(params["e1bn2"])
    t2 = t2 + b2[None, :] * s2

    # deepclass: fold per-feature eval-mode BN into the Linear weights/biases.
    Wc, bc = [], []
    for (W, b), (g, beta, mu, var) in params["dc"]:
        scale = g / jnp.sqrt(var + EPS)
        Wc.append(W * scale[None, :])
        bc.append(b * scale + beta - mu * scale)
    Wl, bl = params["logits"]

    # bf16 weight slab: [W1, W2, Wc0..Wc3], each zero-padded to (EP, EP).
    wslab = jnp.stack([pad2(W1, EP, EP), pad2(W2, EP, EP)] +
                      [pad2(W, EP, EP) for W in Wc]).astype(jnp.bfloat16)

    # f32 constant slab (5, R, EP).
    misc = jnp.zeros((R, EP), jnp.float32)
    for k in range(4):
        misc = misc.at[k, :E].set(bc[k])
    misc = misc.at[4, :E].set(Wl[:, 0])
    misc = misc.at[5, 0].set(bl[0])
    cslab = jnp.stack([pad2(s1, R, EP), pad2(t1, R, EP),
                       pad2(s2, R, EP), pad2(t2, R, EP), misc])
    return wslab, cslab


# ------------------------------ wrapper / glue ------------------------------ #
def ncc_forward_pallas(packed, xVal, yVal):
    """Eval-mode NCC forward (dropout=identity, BN=running-stat affine)."""
    wslab, cslab = packed
    B, D, _ = xVal.shape
    xy = jnp.concatenate([xVal, yVal], axis=2).reshape(B * D, 2)
    xy_p = jnp.pad(xy, ((0, 0), (0, EP - 2)))              # K padded 2 -> 128

    kernel = functools.partial(ncc_kernel, B=B, D=D)
    vmem = pl.BlockSpec(memory_space=pltpu.MemorySpace.VMEM)
    out = pl.pallas_call(
        kernel,
        out_shape=jax.ShapeDtypeStruct((B, 2), jnp.float32),
        in_specs=[vmem, vmem, vmem],
        out_specs=vmem,
    )(xy_p, wslab, cslab)
    return out[:, 0:1], out[:, 1:2]


# -------------------------- deterministic parameters ------------------------ #
def init_params(key):
    kit = iter(jax.random.split(key, 40))

    def lin(fan_in, fan_out):
        bound = 1.0 / math.sqrt(fan_in)
        W = jax.random.uniform(next(kit), (fan_in, fan_out), jnp.float32, -bound, bound)
        b = jax.random.uniform(next(kit), (fan_out,), jnp.float32, -bound, bound)
        return W, b

    def bn(n):
        g = 1.0 + 0.1 * jax.random.normal(next(kit), (n,), jnp.float32)
        beta = 0.1 * jax.random.normal(next(kit), (n,), jnp.float32)
        mu = 0.1 * jax.random.normal(next(kit), (n,), jnp.float32)
        var = 1.0 + 0.1 * jnp.abs(jax.random.normal(next(kit), (n,), jnp.float32))
        return g, beta, mu, var

    return {
        "e1l1": lin(2, E),
        "e1bn1": bn(E),
        "e1l2": lin(E, E),
        "e1bn2": bn(E),
        "dc": [(lin(E, E), bn(E)) for _ in range(4)],
        "logits": lin(E, 1),
    }


# ------------------------------ pure-JAX reference -------------------------- #
def ncc_forward_ref(params, xVal, yVal):
    B, D, _ = xVal.shape
    hp = jax.lax.Precision.HIGHEST
    xy = jnp.concatenate([xVal, yVal], axis=2)             # (B, D, 2)

    def bn_view(x, bn):   # eval-mode BatchNorm1d applied to x.view(B, E, D)
        g, beta, mu, var = bn
        v = x.reshape(B, E, D)
        v = (v - mu[None, :, None]) / jnp.sqrt(var[None, :, None] + EPS)
        v = v * g[None, :, None] + beta[None, :, None]
        return v.reshape(B, D, E)

    W1, b1 = params["e1l1"]
    h = jnp.dot(xy, W1, precision=hp) + b1
    h = jnp.maximum(bn_view(h, params["e1bn1"]), 0.0)
    W2, b2 = params["e1l2"]
    for _ in range(3):
        h = jnp.dot(h, W2, precision=hp) + b2
        h = jnp.maximum(bn_view(h, params["e1bn2"]), 0.0)
    z = jnp.mean(h, axis=1)                                # mean(e1D4, dim=1)
    for _ in range(2):                                     # deepclass applied twice
        for (W, b), (g, beta, mu, var) in params["dc"]:
            z = jnp.dot(z, W, precision=hp) + b
            z = (z - mu) / jnp.sqrt(var + EPS) * g + beta
            z = jnp.maximum(z, 0.0)
    Wl, bl = params["logits"]
    lg = jnp.dot(z, Wl, precision=hp) + bl
    return lg, jax.nn.sigmoid(lg)


if __name__ == "__main__":
    B, D = 4, 8                                            # BatchSize, DataSize
    key = jax.random.PRNGKey(0)
    kp, kx, ky = jax.random.split(key, 3)
    params = init_params(kp)
    xVal = jax.random.normal(kx, (B, D, 1), jnp.float32)
    yVal = jax.random.normal(ky, (B, D, 1), jnp.float32)

    packed = pack_ncc_params(params, D)                    # one-time packing
    logits, prob = ncc_forward_pallas(packed, xVal, yVal)
    jax.block_until_ready((logits, prob))

    ref_logits, ref_prob = ncc_forward_ref(params, xVal, yVal)
    # bf16 MXU operands with f32 accumulate; 1e-2 comfortably bounds the error.
    np.testing.assert_allclose(np.asarray(logits), np.asarray(ref_logits),
                               rtol=1e-2, atol=1e-2)
    np.testing.assert_allclose(np.asarray(prob), np.asarray(ref_prob),
                               rtol=1e-2, atol=1e-2)
    print("KERNEL_OK")
</pallas_src>

<mosaic_0001>
module attributes {stable_mosaic.version = 11 : i64} {
  func.func @ncc_kernel(%arg0: memref<32x128xf32, #tpu.memory_space<vmem>>, %arg1: memref<6x128x128xbf16, #tpu.memory_space<vmem>>, %arg2: memref<5x8x128xf32, #tpu.memory_space<vmem>>, %arg3: memref<4x2xf32, #tpu.memory_space<vmem>>) attributes {dimension_semantics = [], scalar_prefetch = 0 : i64, scratch_operands = 0 : i64, tpu.core_type = #tpu.core_type<tc>} {
    %c0 = arith.constant 0 : index
    %c0_0 = arith.constant 0 : index
    %c0_1 = arith.constant 0 : index
    %0 = vector.load %arg2[%c0, %c0_0, %c0_1] : memref<5x8x128xf32, #tpu.memory_space<vmem>>, vector<1x8x128xf32>
    %1 = vector.shape_cast %0 : vector<1x8x128xf32> to vector<8x128xf32>
    %2 = vector.shape_cast %1 : vector<8x128xf32> to vector<1x8x128xf32>
    %3 = vector.shape_cast %2 : vector<1x8x128xf32> to vector<1x8x128xf32>
    %4 = vector.broadcast %3 : vector<1x8x128xf32> to vector<4x8x128xf32>
    %5 = vector.shape_cast %4 : vector<4x8x128xf32> to vector<32x128xf32>
    %c1 = arith.constant 1 : index
    %c0_2 = arith.constant 0 : index
    %c0_3 = arith.constant 0 : index
    %6 = vector.load %arg2[%c1, %c0_2, %c0_3] : memref<5x8x128xf32, #tpu.memory_space<vmem>>, vector<1x8x128xf32>
    %7 = vector.shape_cast %6 : vector<1x8x128xf32> to vector<8x128xf32>
    %8 = vector.shape_cast %7 : vector<8x128xf32> to vector<1x8x128xf32>
    %9 = vector.shape_cast %8 : vector<1x8x128xf32> to vector<1x8x128xf32>
    %10 = vector.broadcast %9 : vector<1x8x128xf32> to vector<4x8x128xf32>
    %11 = vector.shape_cast %10 : vector<4x8x128xf32> to vector<32x128xf32>
    %c2 = arith.constant 2 : index
    %c0_4 = arith.constant 0 : index
    %c0_5 = arith.constant 0 : index
    %12 = vector.load %arg2[%c2, %c0_4, %c0_5] : memref<5x8x128xf32, #tpu.memory_space<vmem>>, vector<1x8x128xf32>
    %13 = vector.shape_cast %12 : vector<1x8x128xf32> to vector<8x128xf32>
    %14 = vector.shape_cast %13 : vector<8x128xf32> to vector<1x8x128xf32>
    %15 = vector.shape_cast %14 : vector<1x8x128xf32> to vector<1x8x128xf32>
    %16 = vector.broadcast %15 : vector<1x8x128xf32> to vector<4x8x128xf32>
    %17 = vector.shape_cast %16 : vector<4x8x128xf32> to vector<32x128xf32>
    %c3 = arith.constant 3 : index
    %c0_6 = arith.constant 0 : index
    %c0_7 = arith.constant 0 : index
    %18 = vector.load %arg2[%c3, %c0_6, %c0_7] : memref<5x8x128xf32, #tpu.memory_space<vmem>>, vector<1x8x128xf32>
    %19 = vector.shape_cast %18 : vector<1x8x128xf32> to vector<8x128xf32>
    %20 = vector.shape_cast %19 : vector<8x128xf32> to vector<1x8x128xf32>
    %21 = vector.shape_cast %20 : vector<1x8x128xf32> to vector<1x8x128xf32>
    %22 = vector.broadcast %21 : vector<1x8x128xf32> to vector<4x8x128xf32>
    %23 = vector.shape_cast %22 : vector<4x8x128xf32> to vector<32x128xf32>
    %c4 = arith.constant 4 : index
    %c0_8 = arith.constant 0 : index
    %c0_9 = arith.constant 0 : index
    %24 = vector.load %arg2[%c4, %c0_8, %c0_9] : memref<5x8x128xf32, #tpu.memory_space<vmem>>, vector<1x8x128xf32>
    %25 = vector.shape_cast %24 : vector<1x8x128xf32> to vector<8x128xf32>
    %c0_10 = arith.constant 0 : index
    %c0_11 = arith.constant 0 : index
    %26 = vector.load %arg0[%c0_10, %c0_11] : memref<32x128xf32, #tpu.memory_space<vmem>>, vector<32x128xf32>
    %27 = arith.truncf %26 : vector<32x128xf32> to vector<32x128xbf16>
    %c0_12 = arith.constant 0 : index
    %c0_13 = arith.constant 0 : index
    %c0_14 = arith.constant 0 : index
    %28 = vector.load %arg1[%c0_12, %c0_13, %c0_14] : memref<6x128x128xbf16, #tpu.memory_space<vmem>>, vector<1x128x128xbf16>
    %29 = vector.shape_cast %28 : vector<1x128x128xbf16> to vector<128x128xbf16>
    %cst = arith.constant dense<0.000000e+00> : vector<32x128xf32>
    %30 = tpu.matmul %27, %29, %cst {dimension_numbers = #tpu.dot_dimension_numbers<[1], [0], [0], [1], [0, 0, 1, 1], [], []>} : vector<32x128xbf16>, vector<128x128xbf16>, vector<32x128xf32> -> vector<32x128xf32>
    %31 = arith.mulf %30, %5 : vector<32x128xf32>
    %32 = arith.addf %31, %11 : vector<32x128xf32>
    %cst_15 = arith.constant 0.000000e+00 : f32
    %33 = vector.broadcast %cst_15 : f32 to vector<32x128xf32>
    %34 = arith.maximumf %32, %33 : vector<32x128xf32>
    %c1_16 = arith.constant 1 : index
    %c0_17 = arith.constant 0 : index
    %c0_18 = arith.constant 0 : index
    %35 = vector.load %arg1[%c1_16, %c0_17, %c0_18] : memref<6x128x128xbf16, #tpu.memory_space<vmem>>, vector<1x128x128xbf16>
    %36 = vector.shape_cast %35 : vector<1x128x128xbf16> to vector<128x128xbf16>
    %37 = arith.truncf %34 : vector<32x128xf32> to vector<32x128xbf16>
    %cst_19 = arith.constant dense<0.000000e+00> : vector<32x128xf32>
    %38 = tpu.matmul %37, %36, %cst_19 {dimension_numbers = #tpu.dot_dimension_numbers<[1], [0], [0], [1], [0, 0, 1, 1], [], []>} : vector<32x128xbf16>, vector<128x128xbf16>, vector<32x128xf32> -> vector<32x128xf32>
    %39 = arith.mulf %38, %17 : vector<32x128xf32>
    %40 = arith.addf %39, %23 : vector<32x128xf32>
    %cst_20 = arith.constant 0.000000e+00 : f32
    %41 = vector.broadcast %cst_20 : f32 to vector<32x128xf32>
    %42 = arith.maximumf %40, %41 : vector<32x128xf32>
    %43 = arith.truncf %42 : vector<32x128xf32> to vector<32x128xbf16>
    %cst_21 = arith.constant dense<0.000000e+00> : vector<32x128xf32>
    %44 = tpu.matmul %43, %36, %cst_21 {dimension_numbers = #tpu.dot_dimension_numbers<[1], [0], [0], [1], [0, 0, 1, 1], [], []>} : vector<32x128xbf16>, vector<128x128xbf16>, vector<32x128xf32> -> vector<32x128xf32>
    %45 = arith.mulf %44, %17 : vector<32x128xf32>
    %46 = arith.addf %45, %23 : vector<32x128xf32>
    %cst_22 = arith.constant 0.000000e+00 : f32
    %47 = vector.broadcast %cst_22 : f32 to vector<32x128xf32>
    %48 = arith.maximumf %46, %47 : vector<32x128xf32>
    %49 = arith.truncf %48 : vector<32x128xf32> to vector<32x128xbf16>
    %cst_23 = arith.constant dense<0.000000e+00> : vector<32x128xf32>
    %50 = tpu.matmul %49, %36, %cst_23 {dimension_numbers = #tpu.dot_dimension_numbers<[1], [0], [0], [1], [0, 0, 1, 1], [], []>} : vector<32x128xbf16>, vector<128x128xbf16>, vector<32x128xf32> -> vector<32x128xf32>
    %51 = arith.mulf %50, %17 : vector<32x128xf32>
    %52 = arith.addf %51, %23 : vector<32x128xf32>
    %cst_24 = arith.constant 0.000000e+00 : f32
    %53 = vector.broadcast %cst_24 : f32 to vector<32x128xf32>
    %54 = arith.maximumf %52, %53 : vector<32x128xf32>
    %55 = vector.shape_cast %54 : vector<32x128xf32> to vector<4x8x128xf32>
    %cst_25 = arith.constant dense<0.000000e+00> : vector<4x128xf32>
    %56 = vector.multi_reduction <add>, %55, %cst_25 [1] : vector<4x8x128xf32> to vector<4x128xf32>
    %cst_26 = arith.constant 8.000000e+00 : f32
    %57 = vector.broadcast %cst_26 : f32 to vector<4x128xf32>
    %58 = arith.divf %56, %57 : vector<4x128xf32>
    %59 = arith.truncf %58 : vector<4x128xf32> to vector<4x128xbf16>
    %c2_27 = arith.constant 2 : index
    %c0_28 = arith.constant 0 : index
    %c0_29 = arith.constant 0 : index
    %60 = vector.load %arg1[%c2_27, %c0_28, %c0_29] : memref<6x128x128xbf16, #tpu.memory_space<vmem>>, vector<1x128x128xbf16>
    %61 = vector.shape_cast %60 : vector<1x128x128xbf16> to vector<128x128xbf16>
    %cst_30 = arith.constant dense<0.000000e+00> : vector<4x128xf32>
    %62 = tpu.matmul %59, %61, %cst_30 {dimension_numbers = #tpu.dot_dimension_numbers<[1], [0], [0], [1], [0, 0, 1, 1], [], []>} : vector<4x128xbf16>, vector<128x128xbf16>, vector<4x128xf32> -> vector<4x128xf32>
    %63 = vector.extract_strided_slice %25 {offsets = [0, 0], sizes = [1, 128], strides = [1, 1]} : vector<8x128xf32> to vector<1x128xf32>
    %64 = vector.broadcast %63 : vector<1x128xf32> to vector<4x128xf32>
    %65 = arith.addf %62, %64 : vector<4x128xf32>
    %cst_31 = arith.constant 0.000000e+00 : f32
    %66 = vector.broadcast %cst_31 : f32 to vector<4x128xf32>
    %67 = arith.maximumf %65, %66 : vector<4x128xf32>
    %68 = arith.truncf %67 : vector<4x128xf32> to vector<4x128xbf16>
    %c3_32 = arith.constant 3 : index
    %c0_33 = arith.constant 0 : index
    %c0_34 = arith.constant 0 : index
    %69 = vector.load %arg1[%c3_32, %c0_33, %c0_34] : memref<6x128x128xbf16, #tpu.memory_space<vmem>>, vector<1x128x128xbf16>
    %70 = vector.shape_cast %69 : vector<1x128x128xbf16> to vector<128x128xbf16>
    %cst_35 = arith.constant dense<0.000000e+00> : vector<4x128xf32>
    %71 = tpu.matmul %68, %70, %cst_35 {dimension_numbers = #tpu.dot_dimension_numbers<[1], [0], [0], [1], [0, 0, 1, 1], [], []>} : vector<4x128xbf16>, vector<128x128xbf16>, vector<4x128xf32> -> vector<4x128xf32>
    %72 = vector.extract_strided_slice %25 {offsets = [1, 0], sizes = [1, 128], strides = [1, 1]} : vector<8x128xf32> to vector<1x128xf32>
    %73 = vector.broadcast %72 : vector<1x128xf32> to vector<4x128xf32>
    %74 = arith.addf %71, %73 : vector<4x128xf32>
    %cst_36 = arith.constant 0.000000e+00 : f32
    %75 = vector.broadcast %cst_36 : f32 to vector<4x128xf32>
    %76 = arith.maximumf %74, %75 : vector<4x128xf32>
    %77 = arith.truncf %76 : vector<4x128xf32> to vector<4x128xbf16>
    %c4_37 = arith.constant 4 : index
    %c0_38 = arith.constant 0 : index
    %c0_39 = arith.constant 0 : index
    %78 = vector.load %arg1[%c4_37, %c0_38, %c0_39] : memref<6x128x128xbf16, #tpu.memory_space<vmem>>, vector<1x128x128xbf16>
    %79 = vector.shape_cast %78 : vector<1x128x128xbf16> to vector<128x128xbf16>
    %cst_40 = arith.constant dense<0.000000e+00> : vector<4x128xf32>
    %80 = tpu.matmul %77, %79, %cst_40 {dimension_numbers = #tpu.dot_dimension_numbers<[1], [0], [0], [1], [0, 0, 1, 1], [], []>} : vector<4x128xbf16>, vector<128x128xbf16>, vector<4x128xf32> -> vector<4x128xf32>
    %81 = vector.extract_strided_slice %25 {offsets = [2, 0], sizes = [1, 128], strides = [1, 1]} : vector<8x128xf32> to vector<1x128xf32>
    %82 = vector.broadcast %81 : vector<1x128xf32> to vector<4x128xf32>
    %83 = arith.addf %80, %82 : vector<4x128xf32>
    %cst_41 = arith.constant 0.000000e+00 : f32
    %84 = vector.broadcast %cst_41 : f32 to vector<4x128xf32>
    %85 = arith.maximumf %83, %84 : vector<4x128xf32>
    %86 = arith.truncf %85 : vector<4x128xf32> to vector<4x128xbf16>
    %c5 = arith.constant 5 : index
    %c0_42 = arith.constant 0 : index
    %c0_43 = arith.constant 0 : index
    %87 = vector.load %arg1[%c5, %c0_42, %c0_43] : memref<6x128x128xbf16, #tpu.memory_space<vmem>>, vector<1x128x128xbf16>
    %88 = vector.shape_cast %87 : vector<1x128x128xbf16> to vector<128x128xbf16>
    %cst_44 = arith.constant dense<0.000000e+00> : vector<4x128xf32>
    %89 = tpu.matmul %86, %88, %cst_44 {dimension_numbers = #tpu.dot_dimension_numbers<[1], [0], [0], [1], [0, 0, 1, 1], [], []>} : vector<4x128xbf16>, vector<128x128xbf16>, vector<4x128xf32> -> vector<4x128xf32>
    %90 = vector.extract_strided_slice %25 {offsets = [3, 0], sizes = [1, 128], strides = [1, 1]} : vector<8x128xf32> to vector<1x128xf32>
    %91 = vector.broadcast %90 : vector<1x128xf32> to vector<4x128xf32>
    %92 = arith.addf %89, %91 : vector<4x128xf32>
    %cst_45 = arith.constant 0.000000e+00 : f32
    %93 = vector.broadcast %cst_45 : f32 to vector<4x128xf32>
    %94 = arith.maximumf %92, %93 : vector<4x128xf32>
    %95 = arith.truncf %94 : vector<4x128xf32> to vector<4x128xbf16>
    %c2_46 = arith.constant 2 : index
    %c0_47 = arith.constant 0 : index
    %c0_48 = arith.constant 0 : index
    %96 = vector.load %arg1[%c2_46, %c0_47, %c0_48] : memref<6x128x128xbf16, #tpu.memory_space<vmem>>, vector<1x128x128xbf16>
    %97 = vector.shape_cast %96 : vector<1x128x128xbf16> to vector<128x128xbf16>
    %cst_49 = arith.constant dense<0.000000e+00> : vector<4x128xf32>
    %98 = tpu.matmul %95, %97, %cst_49 {dimension_numbers = #tpu.dot_dimension_numbers<[1], [0], [0], [1], [0, 0, 1, 1], [], []>} : vector<4x128xbf16>, vector<128x128xbf16>, vector<4x128xf32> -> vector<4x128xf32>
    %99 = vector.extract_strided_slice %25 {offsets = [0, 0], sizes = [1, 128], strides = [1, 1]} : vector<8x128xf32> to vector<1x128xf32>
    %100 = vector.broadcast %99 : vector<1x128xf32> to vector<4x128xf32>
    %101 = arith.addf %98, %100 : vector<4x128xf32>
    %cst_50 = arith.constant 0.000000e+00 : f32
    %102 = vector.broadcast %cst_50 : f32 to vector<4x128xf32>
    %103 = arith.maximumf %101, %102 : vector<4x128xf32>
    %104 = arith.truncf %103 : vector<4x128xf32> to vector<4x128xbf16>
    %c3_51 = arith.constant 3 : index
    %c0_52 = arith.constant 0 : index
    %c0_53 = arith.constant 0 : index
    %105 = vector.load %arg1[%c3_51, %c0_52, %c0_53] : memref<6x128x128xbf16, #tpu.memory_space<vmem>>, vector<1x128x128xbf16>
    %106 = vector.shape_cast %105 : vector<1x128x128xbf16> to vector<128x128xbf16>
    %cst_54 = arith.constant dense<0.000000e+00> : vector<4x128xf32>
    %107 = tpu.matmul %104, %106, %cst_54 {dimension_numbers = #tpu.dot_dimension_numbers<[1], [0], [0], [1], [0, 0, 1, 1], [], []>} : vector<4x128xbf16>, vector<128x128xbf16>, vector<4x128xf32> -> vector<4x128xf32>
    %108 = vector.extract_strided_slice %25 {offsets = [1, 0], sizes = [1, 128], strides = [1, 1]} : vector<8x128xf32> to vector<1x128xf32>
    %109 = vector.broadcast %108 : vector<1x128xf32> to vector<4x128xf32>
    %110 = arith.addf %107, %109 : vector<4x128xf32>
    %cst_55 = arith.constant 0.000000e+00 : f32
    %111 = vector.broadcast %cst_55 : f32 to vector<4x128xf32>
    %112 = arith.maximumf %110, %111 : vector<4x128xf32>
    %113 = arith.truncf %112 : vector<4x128xf32> to vector<4x128xbf16>
    %c4_56 = arith.constant 4 : index
    %c0_57 = arith.constant 0 : index
    %c0_58 = arith.constant 0 : index
    %114 = vector.load %arg1[%c4_56, %c0_57, %c0_58] : memref<6x128x128xbf16, #tpu.memory_space<vmem>>, vector<1x128x128xbf16>
    %115 = vector.shape_cast %114 : vector<1x128x128xbf16> to vector<128x128xbf16>
    %cst_59 = arith.constant dense<0.000000e+00> : vector<4x128xf32>
    %116 = tpu.matmul %113, %115, %cst_59 {dimension_numbers = #tpu.dot_dimension_numbers<[1], [0], [0], [1], [0, 0, 1, 1], [], []>} : vector<4x128xbf16>, vector<128x128xbf16>, vector<4x128xf32> -> vector<4x128xf32>
    %117 = vector.extract_strided_slice %25 {offsets = [2, 0], sizes = [1, 128], strides = [1, 1]} : vector<8x128xf32> to vector<1x128xf32>
    %118 = vector.broadcast %117 : vector<1x128xf32> to vector<4x128xf32>
    %119 = arith.addf %116, %118 : vector<4x128xf32>
    %cst_60 = arith.constant 0.000000e+00 : f32
    %120 = vector.broadcast %cst_60 : f32 to vector<4x128xf32>
    %121 = arith.maximumf %119, %120 : vector<4x128xf32>
    %122 = arith.truncf %121 : vector<4x128xf32> to vector<4x128xbf16>
    %c5_61 = arith.constant 5 : index
    %c0_62 = arith.constant 0 : index
    %c0_63 = arith.constant 0 : index
    %123 = vector.load %arg1[%c5_61, %c0_62, %c0_63] : memref<6x128x128xbf16, #tpu.memory_space<vmem>>, vector<1x128x128xbf16>
    %124 = vector.shape_cast %123 : vector<1x128x128xbf16> to vector<128x128xbf16>
    %cst_64 = arith.constant dense<0.000000e+00> : vector<4x128xf32>
    %125 = tpu.matmul %122, %124, %cst_64 {dimension_numbers = #tpu.dot_dimension_numbers<[1], [0], [0], [1], [0, 0, 1, 1], [], []>} : vector<4x128xbf16>, vector<128x128xbf16>, vector<4x128xf32> -> vector<4x128xf32>
    %126 = vector.extract_strided_slice %25 {offsets = [3, 0], sizes = [1, 128], strides = [1, 1]} : vector<8x128xf32> to vector<1x128xf32>
    %127 = vector.broadcast %126 : vector<1x128xf32> to vector<4x128xf32>
    %128 = arith.addf %125, %127 : vector<4x128xf32>
    %cst_65 = arith.constant 0.000000e+00 : f32
    %129 = vector.broadcast %cst_65 : f32 to vector<4x128xf32>
    %130 = arith.maximumf %128, %129 : vector<4x128xf32>
    %131 = vector.extract_strided_slice %25 {offsets = [4, 0], sizes = [1, 128], strides = [1, 1]} : vector<8x128xf32> to vector<1x128xf32>
    %132 = vector.broadcast %131 : vector<1x128xf32> to vector<4x128xf32>
    %133 = arith.mulf %130, %132 : vector<4x128xf32>
    %134 = vector.extract_strided_slice %25 {offsets = [5, 0], sizes = [1, 128], strides = [1, 1]} : vector<8x128xf32> to vector<1x128xf32>
    %135 = vector.broadcast %134 : vector<1x128xf32> to vector<4x128xf32>
    %136 = arith.addf %133, %135 : vector<4x128xf32>
    %cst_66 = arith.constant dense<0.000000e+00> : vector<4xf32>
    %137 = vector.multi_reduction <add>, %136, %cst_66 [1] : vector<4x128xf32> to vector<4xf32>
    %138 = vector.shape_cast %137 : vector<4xf32> to vector<4x1xf32>
    %c0_67 = arith.constant 0 : index
    %c0_68 = arith.constant 0 : index
    %139 = vector.load %arg3[%c0_67, %c0_68] : memref<4x2xf32, #tpu.memory_space<vmem>>, vector<4x1xf32>
    tpu.vector_store %arg3[%c0_67, %c0_68], %138 {strides = array<i32>} : memref<4x2xf32, #tpu.memory_space<vmem>>, vector<4x1xf32>,
    %140 = arith.negf %138 : vector<4x1xf32>
    %141 = math.exp %140 : vector<4x1xf32>
    %cst_69 = arith.constant 1.000000e+00 : f32
    %142 = vector.broadcast %cst_69 : f32 to vector<4x1xf32>
    %143 = arith.addf %142, %141 : vector<4x1xf32>
    %144 = arith.divf %142, %143 : vector<4x1xf32>
    %c0_70 = arith.constant 0 : index
    %c1_71 = arith.constant 1 : index
    %145 = vector.load %arg3[%c0_70, %c1_71] : memref<4x2xf32, #tpu.memory_space<vmem>>, vector<4x1xf32>
    tpu.vector_store %arg3[%c0_70, %c1_71], %144 {strides = array<i32>} : memref<4x2xf32, #tpu.memory_space<vmem>>, vector<4x1xf32>,
    return
  }
}

</mosaic_0001>

<llo_original>
// kernel: tpu_custom_call.1
$region0: #{tpu_custom_call.1}
  #allocation0 [shape = 'u32[]', space=smem, size = 0x4, offset = 0x4, fixed_abs, tag = 'smem constant byte address 0x4 - core index']
  #allocation1 [shape = 'u32[144,128]{1,0:T(1,128)}', space=vmem, size = 0x12000, scoped, tag = 'internal scratch']
  %s0 = inlined_call_operand.hbm [shape: f32[32,128], index: 0, kind: input, shape index: {}]
  %s1 = inlined_call_operand.hbm [shape: bf16[6,128,128], index: 1, kind: input, shape index: {}]
  %s2 = inlined_call_operand.hbm [shape: f32[5,8,128], index: 2, kind: input, shape index: {}]
  %s3 = inlined_call_operand.vmem [shape: f32[4,2], index: 3, kind: output, shape index: {}]
  %s4 = sld [smem:[#allocation0]]
  $region34: #{tpu_custom_call.1} parent=0
    _
  %s6 = ssub.s32 1, %s4
  %s7 = scalar_select 0, %s6, %s4
  $region1: #{tpu_custom_call.1} parent=0
    #allocation2 [shape = 'u8[16384]{0}', space=vmem, size = 0x4000, scoped, tag = 'input window, operand 0, single buffered']
    #allocation3 [shape = 's32[1]{0}', space=sflag, size = 0x4, scoped, tag = 'scoped memory for tpu_custom_call.1']
    #allocation4 [shape = 'u8[196608]{0}', space=vmem, size = 0x30000, scoped, tag = 'input window, operand 1, single buffered']
    #allocation5 [shape = 's32[1]{0}', space=sflag, size = 0x4, scoped, tag = 'scoped memory for tpu_custom_call.1']
    #allocation6 [shape = 'u8[20480]{0}', space=vmem, size = 0x5000, scoped, tag = 'input window, operand 2, single buffered']
    %8 = vsyncpa [#allocation3], 0
    %9 = vsyncpa [#allocation5], 0
    // Predicated region
    $region2: #{tpu_custom_call.1} parent=1 // pred_check
      _
    $region3: #{tpu_custom_call.1} parent=1 // pred_check_branch
      %11 = sbr.rel (0) target = $region5
    $region4: #{tpu_custom_call.1} parent=1 // pred_region
      %s13 = ssub.s32 512, 512
      %14 = vsyncadd [#allocation3], %s13
      %s15 = sshll.u32 [#allocation2], 4
      %s16 = int_to_ptr.vmem [resolvable:$true] %s15
      %21 = dma.hbm_to_vmem [thread:$0]  %s0, 512, %s16, [#allocation3], 128, 128, 8
    $region5: #{tpu_custom_call.1} parent=1 // pred_fallthru
      _
    // Predicated region
    $region6: #{tpu_custom_call.1} parent=1 // pred_check
      _
    $region7: #{tpu_custom_call.1} parent=1 // pred_check_branch
      %23 = sbr.rel (0) target = $region9
    $region8: #{tpu_custom_call.1} parent=1 // pred_region
      %s25 = ssub.s32 6144, 6144
      %26 = vsyncadd [#allocation5], %s25
      %s27 = sshll.u32 [#allocation4], 4
      %s28 = int_to_ptr.vmem [resolvable:$true] %s27
      %33 = dma.hbm_to_vmem [thread:$0]  %s1, 6144, %s28, [#allocation5], 64, 64, 4
    $region9: #{tpu_custom_call.1} parent=1 // pred_fallthru
      _
    // Predicated region
    $region10: #{tpu_custom_call.1} parent=1 // pred_check
      _
    $region11: #{tpu_custom_call.1} parent=1 // pred_check_branch
      %35 = sbr.rel (0) target = $region13
    $region12: #{tpu_custom_call.1} parent=1 // pred_region
      %s37 = ssub.s32 640, 640
      %38 = vsyncadd [#allocation5], %s37
      %s39 = sshll.u32 [#allocation6], 4
      %s40 = int_to_ptr.vmem [resolvable:$true] %s39
      %45 = dma.hbm_to_vmem [thread:$0]  %s2, 640, %s40, [#allocation5], 128, 128, 8
    $region13: #{tpu_custom_call.1} parent=1 // pred_fallthru
      _
    // Predicated region
    $region14: #{tpu_custom_call.1} parent=1 // pred_check
      _
    $region15: #{tpu_custom_call.1} parent=1 // pred_check_branch
      %47 = sbr.rel (0) target = $region17
    $region16: #{tpu_custom_call.1} parent=1 // pred_region
      %48 = dma.done [#allocation3], 512
    $region17: #{tpu_custom_call.1} parent=1 // pred_fallthru
      _
    // Predicated region
    $region18: #{tpu_custom_call.1} parent=1 // pred_check
      _
    $region19: #{tpu_custom_call.1} parent=1 // pred_check_branch
      %50 = sbr.rel (0) target = $region21
    $region20: #{tpu_custom_call.1} parent=1 // pred_region
      %51 = dma.done [#allocation5], 6144
    $region21: #{tpu_custom_call.1} parent=1 // pred_fallthru
      _
    // Predicated region
    $region22: #{tpu_custom_call.1} parent=1 // pred_check
      _
    $region23: #{tpu_custom_call.1} parent=1 // pred_check_branch
      %53 = sbr.rel (0) target = $region25
    $region24: #{tpu_custom_call.1} parent=1 // pred_region
      %54 = dma.done [#allocation5], 640
    $region25: #{tpu_custom_call.1} parent=1 // pred_fallthru
      _
    %v56 = vld [vmem:[#allocation6] sm:$0xff]
    %s57 = scalar_lea.vmem [#allocation6], 8
    %v58 = vld [vmem:[%s57] sm:$0xff]
    %s59 = scalar_lea.vmem [#allocation6], 16
    %v60 = vld [vmem:[%s59] sm:$0xff]
    %s61 = scalar_lea.vmem [#allocation6], 24
    %v62 = vld [vmem:[%s61] sm:$0xff]
    %s63 = scalar_lea.vmem [#allocation6], 32
    %v64 = vld [vmem:[%s63] sm:$0xff]
    %v65 = vld [vmem:[#allocation2] sm:$0xff]
    %v66 = vld [vmem:[#allocation2 + $0x8] sm:$0xff]
    %v67 = vld [vmem:[#allocation2 + $0x10] sm:$0xff]
    %v68 = vld [vmem:[#allocation2 + $0x18] sm:$0xff]
    %v69 = vpack.c.bf16 %v66, %v65
    %v70 = vpack.c.bf16 %v68, %v67
    %v71 = vld [vmem:[#allocation4] sm:$0xf]
    %v72 = vld [vmem:[#allocation4 + $0x4] sm:$0xf]
    %v73 = vld [vmem:[#allocation4 + $0x8] sm:$0xf]
    %v74 = vld [vmem:[#allocation4 + $0xc] sm:$0xf]
    %v75 = vld [vmem:[#allocation4 + $0x10] sm:$0xf]
    %v76 = vld [vmem:[#allocation4 + $0x14] sm:$0xf]
    %v77 = vld [vmem:[#allocation4 + $0x18] sm:$0xf]
    %v78 = vld [vmem:[#allocation4 + $0x1c] sm:$0xf]
    %v79 = vld [vmem:[#allocation4 + $0x20] sm:$0xf]
    %v80 = vld [vmem:[#allocation4 + $0x24] sm:$0xf]
    %v81 = vld [vmem:[#allocation4 + $0x28] sm:$0xf]
    %v82 = vld [vmem:[#allocation4 + $0x2c] sm:$0xf]
    %v83 = vld [vmem:[#allocation4 + $0x30] sm:$0xf]
    %v84 = vld [vmem:[#allocation4 + $0x34] sm:$0xf]
    %v85 = vld [vmem:[#allocation4 + $0x38] sm:$0xf]
    %v86 = vld [vmem:[#allocation4 + $0x3c] sm:$0xf]
    %v103 = vunpack.c.l.b16 %v71
    %v104 = vunpack.c.l.b16 %v72
    %v105 = vunpack.c.l.b16 %v73
    %v106 = vunpack.c.l.b16 %v74
    %v107 = vunpack.c.l.b16 %v75
    %v108 = vunpack.c.l.b16 %v76
    %v109 = vunpack.c.l.b16 %v77
    %v110 = vunpack.c.l.b16 %v78
    %v111 = vunpack.c.l.b16 %v79
    %v112 = vunpack.c.l.b16 %v80
    %v113 = vunpack.c.l.b16 %v81
    %v114 = vunpack.c.l.b16 %v82
    %v115 = vunpack.c.l.b16 %v83
    %v116 = vunpack.c.l.b16 %v84
    %v117 = vunpack.c.l.b16 %v85
    %v118 = vunpack.c.l.b16 %v86
    %v119 = vpack.c.b16 %v104, %v103
    %v120 = vpack.c.b16 %v106, %v105
    %v121 = vpack.c.b16 %v108, %v107
    %v122 = vpack.c.b16 %v110, %v109
    %v123 = vpack.c.b16 %v112, %v111
    %v124 = vpack.c.b16 %v114, %v113
    %v125 = vpack.c.b16 %v116, %v115
    %v126 = vpack.c.b16 %v118, %v117
    %135 = vmatprep.subr.bf16.mxu0 0
    %136 = vmatpush1.bf16.msra.mxu0 %v126
    %137 = vmatprep.subr.bf16.mxu0 0
    %138 = vmatpush1.bf16.msra.mxu0 %v125
    %139 = vmatprep.subr.bf16.mxu0 0
    %140 = vmatpush1.bf16.msra.mxu0 %v124
    %141 = vmatprep.subr.bf16.mxu0 0
    %142 = vmatpush1.bf16.msra.mxu0 %v123
    %143 = vmatprep.subr.bf16.mxu0 0
    %144 = vmatpush1.bf16.msra.mxu0 %v122
    %145 = vmatprep.subr.bf16.mxu0 0
    %146 = vmatpush1.bf16.msra.mxu0 %v121
    %147 = vmatprep.subr.bf16.mxu0 0
    %148 = vmatpush1.bf16.msra.mxu0 %v120
    %149 = vmatprep.subr.bf16.mxu0 0
    %150 = vmatpush1.bf16.msra.mxu0 %v119
    %151 = vmatprep.subr.bf16.mxu0 0
    %152 = vmatpush2.bf16.msra.mxu0 0
    %153 = vmatprep.subr.bf16.mxu0 0
    %154 = vmatpush2.bf16.msra.mxu0 0
    %155 = vmatprep.subr.bf16.mxu0 0
    %156 = vmatpush2.bf16.msra.mxu0 0
    %157 = vmatprep.subr.bf16.mxu0 0
    %158 = vmatpush2.bf16.msra.mxu0 0
    %159 = vmatprep.subr.bf16.mxu0 0
    %160 = vmatpush2.bf16.msra.mxu0 0
    %161 = vmatprep.subr.bf16.mxu0 0
    %162 = vmatpush2.bf16.msra.mxu0 0
    %163 = vmatprep.subr.bf16.mxu0 0
    %164 = vmatpush2.bf16.msra.mxu0 0
    %165 = vmatprep.subr.bf16.mxu0 0
    %166 = vmatpush2.bf16.msra.mxu0 0
    %167 = vmatprep.mubr.bf16.mxu0 0
    %168 = vmatmul.mubr.bf16.gmra.mxu0 %v69
    %v169 = vpop.f32.mrf.mxu0
    %v170 = vadd.f32 0.0, %v169
    %v171 = vpop.f32.mrf.mxu0
    %v172 = vpop.f32.mrf.mxu0
    %v173 = vadd.f32 0.0, %v172
    %v174 = vpop.f32.mrf.mxu0
    %175 = vmatprep.mubr.bf16.mxu0 0
    %176 = vmatmul.mubr.bf16.gmra.mxu0 %v70
    %v177 = vpop.f32.mrf.mxu0
    %v178 = vadd.f32 0.0, %v177
    %v179 = vpop.f32.mrf.mxu0
    %v180 = vpop.f32.mrf.mxu0
    %v181 = vadd.f32 0.0, %v180
    %v182 = vpop.f32.mrf.mxu0
    %183 = vdwg.mxu0
    %v184 = vmul.f32 %v170, %v56
    %v185 = vmul.f32 %v173, %v56
    %v186 = vmul.f32 %v178, %v56
    %v187 = vmul.f32 %v181, %v56
    %v188 = vadd.f32 %v184, %v58
    %v189 = vadd.f32 %v185, %v58
    %v190 = vadd.f32 %v186, %v58
    %v191 = vadd.f32 %v187, %v58
    %v192 = vmax.f32 %v188, 0.0
    %v193 = vmax.f32 %v189, 0.0
    %v194 = vmax.f32 %v190, 0.0
    %v195 = vmax.f32 %v191, 0.0
    %s196 = scalar_lea.vmem [#allocation4], 64
    %v197 = vld [vmem:[%s196] sm:$0xf]
    %v198 = vld [vmem:[%s196 + $0x4] sm:$0xf]
    %v199 = vld [vmem:[%s196 + $0x8] sm:$0xf]
    %v200 = vld [vmem:[%s196 + $0xc] sm:$0xf]
    %v201 = vld [vmem:[%s196 + $0x10] sm:$0xf]
    %v202 = vld [vmem:[%s196 + $0x14] sm:$0xf]
    %v203 = vld [vmem:[%s196 + $0x18] sm:$0xf]
    %v204 = vld [vmem:[%s196 + $0x1c] sm:$0xf]
    %v205 = vld [vmem:[%s196 + $0x20] sm:$0xf]
    %v206 = vld [vmem:[%s196 + $0x24] sm:$0xf]
    %v207 = vld [vmem:[%s196 + $0x28] sm:$0xf]
    %v208 = vld [vmem:[%s196 + $0x2c] sm:$0xf]
    %v209 = vld [vmem:[%s196 + $0x30] sm:$0xf]
    %v210 = vld [vmem:[%s196 + $0x34] sm:$0xf]
    %v211 = vld [vmem:[%s196 + $0x38] sm:$0xf]
    %v212 = vld [vmem:[%s196 + $0x3c] sm:$0xf]
    %v213 = vpack.c.bf16 %v193, %v192
    %v214 = vpack.c.bf16 %v195, %v194
    %v231 = vunpack.c.l.b16 %v197
    %v232 = vunpack.c.l.b16 %v198
    %v233 = vunpack.c.l.b16 %v199
    %v234 = vunpack.c.l.b16 %v200
    %v235 = vunpack.c.l.b16 %v201
    %v236 = vunpack.c.l.b16 %v202
    %v237 = vunpack.c.l.b16 %v203
    %v238 = vunpack.c.l.b16 %v204
    %v239 = vunpack.c.l.b16 %v205
    %v240 = vunpack.c.l.b16 %v206
    %v241 = vunpack.c.l.b16 %v207
    %v242 = vunpack.c.l.b16 %v208
    %v243 = vunpack.c.l.b16 %v209
    %v244 = vunpack.c.l.b16 %v210
    %v245 = vunpack.c.l.b16 %v211
    %v246 = vunpack.c.l.b16 %v212
    %v247 = vpack.c.b16 %v232, %v231
    %v248 = vpack.c.b16 %v234, %v233
    %v249 = vpack.c.b16 %v236, %v235
    %v250 = vpack.c.b16 %v238, %v237
    %v251 = vpack.c.b16 %v240, %v239
    %v252 = vpack.c.b16 %v242, %v241
    %v253 = vpack.c.b16 %v244, %v243
    %v254 = vpack.c.b16 %v246, %v245
    %263 = vmatprep.subr.bf16.mxu0 0
    %264 = vmatpush1.bf16.msra.mxu0 %v254
    %265 = vmatprep.subr.bf16.mxu0 0
    %266 = vmatpush1.bf16.msra.mxu0 %v253
    %267 = vmatprep.subr.bf16.mxu0 0
    %268 = vmatpush1.bf16.msra.mxu0 %v252
    %269 = vmatprep.subr.bf16.mxu0 0
    %270 = vmatpush1.bf16.msra.mxu0 %v251
    %271 = vmatprep.subr.bf16.mxu0 0
    %272 = vmatpush1.bf16.msra.mxu0 %v250
    %273 = vmatprep.subr.bf16.mxu0 0
    %274 = vmatpush1.bf16.msra.mxu0 %v249
    %275 = vmatprep.subr.bf16.mxu0 0
    %276 = vmatpush1.bf16.msra.mxu0 %v248
    %277 = vmatprep.subr.bf16.mxu0 0
    %278 = vmatpush1.bf16.msra.mxu0 %v247
    %279 = vmatprep.subr.bf16.mxu0 0
    %280 = vmatpush2.bf16.msra.mxu0 0
    %281 = vmatprep.subr.bf16.mxu0 0
    %282 = vmatpush2.bf16.msra.mxu0 0
    %283 = vmatprep.subr.bf16.mxu0 0
    %284 = vmatpush2.bf16.msra.mxu0 0
    %285 = vmatprep.subr.bf16.mxu0 0
    %286 = vmatpush2.bf16.msra.mxu0 0
    %287 = vmatprep.subr.bf16.mxu0 0
    %288 = vmatpush2.bf16.msra.mxu0 0
    %289 = vmatprep.subr.bf16.mxu0 0
    %290 = vmatpush2.bf16.msra.mxu0 0
    %291 = vmatprep.subr.bf16.mxu0 0
    %292 = vmatpush2.bf16.msra.mxu0 0
    %293 = vmatprep.subr.bf16.mxu0 0
    %294 = vmatpush2.bf16.msra.mxu0 0
    %295 = vmatprep.mubr.bf16.mxu0 0
    %296 = vmatmul.mubr.bf16.gmra.mxu0 %v213
    %v297 = vpop.f32.mrf.mxu0
    %v298 = vadd.f32 0.0, %v297
    %v299 = vpop.f32.mrf.mxu0
    %v300 = vpop.f32.mrf.mxu0
    %v301 = vadd.f32 0.0, %v300
    %v302 = vpop.f32.mrf.mxu0
    %303 = vmatprep.mubr.bf16.mxu0 0
    %304 = vmatmul.mubr.bf16.gmra.mxu0 %v214
    %v305 = vpop.f32.mrf.mxu0
    %v306 = vadd.f32 0.0, %v305
    %v307 = vpop.f32.mrf.mxu0
    %v308 = vpop.f32.mrf.mxu0
    %v309 = vadd.f32 0.0, %v308
    %v310 = vpop.f32.mrf.mxu0
    %311 = vdwg.mxu0
    %v312 = vmul.f32 %v298, %v60
    %v313 = vmul.f32 %v301, %v60
    %v314 = vmul.f32 %v306, %v60
    %v315 = vmul.f32 %v309, %v60
    %v316 = vadd.f32 %v312, %v62
    %v317 = vadd.f32 %v313, %v62
    %v318 = vadd.f32 %v314, %v62
    %v319 = vadd.f32 %v315, %v62
    %v320 = vmax.f32 %v316, 0.0
    %v321 = vmax.f32 %v317, 0.0
    %v322 = vmax.f32 %v318, 0.0
    %v323 = vmax.f32 %v319, 0.0
    %v324 = vpack.c.bf16 %v321, %v320
    %v325 = vpack.c.bf16 %v323, %v322
    %326 = vmatprep.subr.bf16.mxu0 0
    %327 = vmatpush1.bf16.msra.mxu0 %v254
    %328 = vmatprep.subr.bf16.mxu0 0
    %329 = vmatpush1.bf16.msra.mxu0 %v253
    %330 = vmatprep.subr.bf16.mxu0 0
    %331 = vmatpush1.bf16.msra.mxu0 %v252
    %332 = vmatprep.subr.bf16.mxu0 0
    %333 = vmatpush1.bf16.msra.mxu0 %v251
    %334 = vmatprep.subr.bf16.mxu0 0
    %335 = vmatpush1.bf16.msra.mxu0 %v250
    %336 = vmatprep.subr.bf16.mxu0 0
    %337 = vmatpush1.bf16.msra.mxu0 %v249
    %338 = vmatprep.subr.bf16.mxu0 0
    %339 = vmatpush1.bf16.msra.mxu0 %v248
    %340 = vmatprep.subr.bf16.mxu0 0
    %341 = vmatpush1.bf16.msra.mxu0 %v247
    %342 = vmatprep.subr.bf16.mxu0 0
    %343 = vmatpush2.bf16.msra.mxu0 0
    %344 = vmatprep.subr.bf16.mxu0 0
    %345 = vmatpush2.bf16.msra.mxu0 0
    %346 = vmatprep.subr.bf16.mxu0 0
    %347 = vmatpush2.bf16.msra.mxu0 0
    %348 = vmatprep.subr.bf16.mxu0 0
    %349 = vmatpush2.bf16.msra.mxu0 0
    %350 = vmatprep.subr.bf16.mxu0 0
    %351 = vmatpush2.bf16.msra.mxu0 0
    %352 = vmatprep.subr.bf16.mxu0 0
    %353 = vmatpush2.bf16.msra.mxu0 0
    %354 = vmatprep.subr.bf16.mxu0 0
    %355 = vmatpush2.bf16.msra.mxu0 0
    %356 = vmatprep.subr.bf16.mxu0 0
    %357 = vmatpush2.bf16.msra.mxu0 0
    %358 = vmatprep.mubr.bf16.mxu0 0
    %359 = vmatmul.mubr.bf16.gmra.mxu0 %v324
    %v360 = vpop.f32.mrf.mxu0
    %v361 = vadd.f32 0.0, %v360
    %v362 = vpop.f32.mrf.mxu0
    %v363 = vpop.f32.mrf.mxu0
    %v364 = vadd.f32 0.0, %v363
    %v365 = vpop.f32.mrf.mxu0
    %366 = vmatprep.mubr.bf16.mxu0 0
    %367 = vmatmul.mubr.bf16.gmra.mxu0 %v325
    %v368 = vpop.f32.mrf.mxu0
    %v369 = vadd.f32 0.0, %v368
    %v370 = vpop.f32.mrf.mxu0
    %v371 = vpop.f32.mrf.mxu0
    %v372 = vadd.f32 0.0, %v371
    %v373 = vpop.f32.mrf.mxu0
    %374 = vdwg.mxu0
    %v375 = vmul.f32 %v361, %v60
    %v376 = vmul.f32 %v364, %v60
    %v377 = vmul.f32 %v369, %v60
    %v378 = vmul.f32 %v372, %v60
    %v379 = vadd.f32 %v375, %v62
    %v380 = vadd.f32 %v376, %v62
    %v381 = vadd.f32 %v377, %v62
    %v382 = vadd.f32 %v378, %v62
    %v383 = vmax.f32 %v379, 0.0
    %v384 = vmax.f32 %v380, 0.0
    %v385 = vmax.f32 %v381, 0.0
    %v386 = vmax.f32 %v382, 0.0
    %v387 = vpack.c.bf16 %v384, %v383
    %v388 = vpack.c.bf16 %v386, %v385
    %389 = vmatprep.subr.bf16.mxu0 0
    %390 = vmatpush1.bf16.msra.mxu0 %v254
    %391 = vmatprep.subr.bf16.mxu0 0
    %392 = vmatpush1.bf16.msra.mxu0 %v253
    %393 = vmatprep.subr.bf16.mxu0 0
    %394 = vmatpush1.bf16.msra.mxu0 %v252
    %395 = vmatprep.subr.bf16.mxu0 0
    %396 = vmatpush1.bf16.msra.mxu0 %v251
    %397 = vmatprep.subr.bf16.mxu0 0
    %398 = vmatpush1.bf16.msra.mxu0 %v250
    %399 = vmatprep.subr.bf16.mxu0 0
    %400 = vmatpush1.bf16.msra.mxu0 %v249
    %401 = vmatprep.subr.bf16.mxu0 0
    %402 = vmatpush1.bf16.msra.mxu0 %v248
    %403 = vmatprep.subr.bf16.mxu0 0
    %404 = vmatpush1.bf16.msra.mxu0 %v247
    %405 = vmatprep.subr.bf16.mxu0 0
    %406 = vmatpush2.bf16.msra.mxu0 0
    %407 = vmatprep.subr.bf16.mxu0 0
    %408 = vmatpush2.bf16.msra.mxu0 0
    %409 = vmatprep.subr.bf16.mxu0 0
    %410 = vmatpush2.bf16.msra.mxu0 0
    %411 = vmatprep.subr.bf16.mxu0 0
    %412 = vmatpush2.bf16.msra.mxu0 0
    %413 = vmatprep.subr.bf16.mxu0 0
    %414 = vmatpush2.bf16.msra.mxu0 0
    %415 = vmatprep.subr.bf16.mxu0 0
    %416 = vmatpush2.bf16.msra.mxu0 0
    %417 = vmatprep.subr.bf16.mxu0 0
    %418 = vmatpush2.bf16.msra.mxu0 0
    %419 = vmatprep.subr.bf16.mxu0 0
    %420 = vmatpush2.bf16.msra.mxu0 0
    %421 = vmatprep.mubr.bf16.mxu0 0
    %422 = vmatmul.mubr.bf16.gmra.mxu0 %v387
    %v423 = vpop.f32.mrf.mxu0
    %v424 = vadd.f32 0.0, %v423
    %v425 = vpop.f32.mrf.mxu0
    %v426 = vpop.f32.mrf.mxu0
    %v427 = vadd.f32 0.0, %v426
    %v428 = vpop.f32.mrf.mxu0
    %429 = vmatprep.mubr.bf16.mxu0 0
    %430 = vmatmul.mubr.bf16.gmra.mxu0 %v388
    %v431 = vpop.f32.mrf.mxu0
    %v432 = vadd.f32 0.0, %v431
    %v433 = vpop.f32.mrf.mxu0
    %v434 = vpop.f32.mrf.mxu0
    %v435 = vadd.f32 0.0, %v434
    %v436 = vpop.f32.mrf.mxu0
    %437 = vdwg.mxu0
    %v438 = vmul.f32 %v424, %v60
    %v439 = vmul.f32 %v427, %v60
    %v440 = vmul.f32 %v432, %v60
    %v441 = vmul.f32 %v435, %v60
    %v442 = vadd.f32 %v438, %v62
    %v443 = vadd.f32 %v439, %v62
    %v444 = vadd.f32 %v440, %v62
    %v445 = vadd.f32 %v441, %v62
    %v446 = vmax.f32 %v442, 0.0
    %v447 = vmax.f32 %v443, 0.0
    %v448 = vmax.f32 %v444, 0.0
    %v449 = vmax.f32 %v445, 0.0
    %v450 = vrot.slane %v446, 4
    %v451 = vadd.f32 %v446, %v450
    %v452 = vrot.slane %v451, 2
    %v453 = vadd.f32 %v451, %v452
    %v454 = vrot.slane %v453, 1
    %v455 = vadd.f32 %v453, %v454
    %v456 = vrot.slane %v447, 4
    %v457 = vadd.f32 %v447, %v456
    %v458 = vrot.slane %v457, 2
    %v459 = vadd.f32 %v457, %v458
    %v460 = vrot.slane %v459, 1
    %v461 = vadd.f32 %v459, %v460
    %v462 = vrot.slane %v448, 4
    %v463 = vadd.f32 %v448, %v462
    %v464 = vrot.slane %v463, 2
    %v465 = vadd.f32 %v463, %v464
    %v466 = vrot.slane %v465, 1
    %v467 = vadd.f32 %v465, %v466
    %v468 = vrot.slane %v449, 4
    %v469 = vadd.f32 %v449, %v468
    %v470 = vrot.slane %v469, 2
    %v471 = vadd.f32 %v469, %v470
    %v472 = vrot.slane %v471, 1
    %v473 = vadd.f32 %v471, %v472
    %v474 = vrcp.pop 8.0
    %v475 = vmul.f32 %v455, %v474
    %v476 = vmul.f32 %v461, %v474
    %v477 = vmul.f32 %v467, %v474
    %v478 = vmul.f32 %v473, %v474
    %v479 = vpack.c.bf16 %v475, %v475
    %v480 = vpack.c.bf16 %v476, %v476
    %v481 = vpack.c.bf16 %v477, %v477
    %v482 = vpack.c.bf16 %v478, %v478
    %s483 = scalar_lea.vmem [#allocation4], 128
    %v484 = vld [vmem:[%s483] sm:$0xf]
    %v485 = vld [vmem:[%s483 + $0x4] sm:$0xf]
    %v486 = vld [vmem:[%s483 + $0x8] sm:$0xf]
    %v487 = vld [vmem:[%s483 + $0xc] sm:$0xf]
    %v488 = vld [vmem:[%s483 + $0x10] sm:$0xf]
    %v489 = vld [vmem:[%s483 + $0x14] sm:$0xf]
    %v490 = vld [vmem:[%s483 + $0x18] sm:$0xf]
    %v491 = vld [vmem:[%s483 + $0x1c] sm:$0xf]
    %v492 = vld [vmem:[%s483 + $0x20] sm:$0xf]
    %v493 = vld [vmem:[%s483 + $0x24] sm:$0xf]
    %v494 = vld [vmem:[%s483 + $0x28] sm:$0xf]
    %v495 = vld [vmem:[%s483 + $0x2c] sm:$0xf]
    %v496 = vld [vmem:[%s483 + $0x30] sm:$0xf]
    %v497 = vld [vmem:[%s483 + $0x34] sm:$0xf]
    %v498 = vld [vmem:[%s483 + $0x38] sm:$0xf]
    %v499 = vld [vmem:[%s483 + $0x3c] sm:$0xf]
    %v500 = vlaneseq
    %v501 = vshrl.u32 %v500, 7
    %v502 = vsub.s32 0, %v501
    %v503 = vrot.slane %v64, %v502
    %v508 = vunpack.c.l.b16 %v479
    %v509 = vunpack.c.l.b16 %v480
    %v510 = vunpack.c.l.b16 %v481
    %v511 = vunpack.c.l.b16 %v482
    %vm512 = vcmask 1041409
    %v513 = vsel %vm512, %v509, %v508
    %vm514 = vcmask 1042434
    %v515 = vsel %vm514, %v510, %v513
    %vm516 = vcmask 1043459
    %v517 = vsel %vm516, %v511, %v515
    %v518 = vpack.c.b16 %v517, %v517
    %v536 = vunpack.c.l.b16 %v484
    %v537 = vunpack.c.l.b16 %v485
    %v538 = vunpack.c.l.b16 %v486
    %v539 = vunpack.c.l.b16 %v487
    %v540 = vunpack.c.l.b16 %v488
    %v541 = vunpack.c.l.b16 %v489
    %v542 = vunpack.c.l.b16 %v490
    %v543 = vunpack.c.l.b16 %v491
    %v544 = vunpack.c.l.b16 %v492
    %v545 = vunpack.c.l.b16 %v493
    %v546 = vunpack.c.l.b16 %v494
    %v547 = vunpack.c.l.b16 %v495
    %v548 = vunpack.c.l.b16 %v496
    %v549 = vunpack.c.l.b16 %v497
    %v550 = vunpack.c.l.b16 %v498
    %v551 = vunpack.c.l.b16 %v499
    %v552 = vpack.c.b16 %v537, %v536
    %v553 = vpack.c.b16 %v539, %v538
    %v554 = vpack.c.b16 %v541, %v540
    %v555 = vpack.c.b16 %v543, %v542
    %v556 = vpack.c.b16 %v545, %v544
    %v557 = vpack.c.b16 %v547, %v546
    %v558 = vpack.c.b16 %v549, %v548
    %v559 = vpack.c.b16 %v551, %v550
    %568 = vmatprep.subr.bf16.mxu0 0
    %569 = vmatpush1.bf16.msra.mxu0 %v559
    %570 = vmatprep.subr.bf16.mxu0 0
    %571 = vmatpush1.bf16.msra.mxu0 %v558
    %572 = vmatprep.subr.bf16.mxu0 0
    %573 = vmatpush1.bf16.msra.mxu0 %v557
    %574 = vmatprep.subr.bf16.mxu0 0
    %575 = vmatpush1.bf16.msra.mxu0 %v556
    %576 = vmatprep.subr.bf16.mxu0 0
    %577 = vmatpush1.bf16.msra.mxu0 %v555
    %578 = vmatprep.subr.bf16.mxu0 0
    %579 = vmatpush1.bf16.msra.mxu0 %v554
    %580 = vmatprep.subr.bf16.mxu0 0
    %581 = vmatpush1.bf16.msra.mxu0 %v553
    %582 = vmatprep.subr.bf16.mxu0 0
    %583 = vmatpush1.bf16.msra.mxu0 %v552
    %584 = vmatprep.subr.bf16.mxu0 0
    %585 = vmatpush2.bf16.msra.mxu0 0
    %586 = vmatprep.subr.bf16.mxu0 0
    %587 = vmatpush2.bf16.msra.mxu0 0
    %588 = vmatprep.subr.bf16.mxu0 0
    %589 = vmatpush2.bf16.msra.mxu0 0
    %590 = vmatprep.subr.bf16.mxu0 0
    %591 = vmatpush2.bf16.msra.mxu0 0
    %592 = vmatprep.subr.bf16.mxu0 0
    %593 = vmatpush2.bf16.msra.mxu0 0
    %594 = vmatprep.subr.bf16.mxu0 0
    %595 = vmatpush2.bf16.msra.mxu0 0
    %596 = vmatprep.subr.bf16.mxu0 0
    %597 = vmatpush2.bf16.msra.mxu0 0
    %598 = vmatprep.subr.bf16.mxu0 0
    %599 = vmatpush2.bf16.msra.mxu0 0
    %600 = vmatprep.mubr.bf16.mxu0 0
    %601 = vmatmul.mubr.bf16.gmra.mxu0 %v518
    %v602 = vpop.f32.mrf.mxu0
    %v603 = vadd.f32 %v503, %v602
    %v604 = vpop.f32.mrf.mxu0
    %v605 = vpop.f32.mrf.mxu0
    %v606 = vpop.f32.mrf.mxu0
    %607 = vdwg.mxu0
    %v608 = vmax.f32 %v603, 0.0
    %v609 = vpack.c.bf16 %v608, %v608
    %s610 = scalar_lea.vmem [#allocation4], 192
    %v611 = vld [vmem:[%s610] sm:$0xf]
    %v612 = vld [vmem:[%s610 + $0x4] sm:$0xf]
    %v613 = vld [vmem:[%s610 + $0x8] sm:$0xf]
    %v614 = vld [vmem:[%s610 + $0xc] sm:$0xf]
    %v615 = vld [vmem:[%s610 + $0x10] sm:$0xf]
    %v616 = vld [vmem:[%s610 + $0x14] sm:$0xf]
    %v617 = vld [vmem:[%s610 + $0x18] sm:$0xf]
    %v618 = vld [vmem:[%s610 + $0x1c] sm:$0xf]
    %v619 = vld [vmem:[%s610 + $0x20] sm:$0xf]
    %v620 = vld [vmem:[%s610 + $0x24] sm:$0xf]
    %v621 = vld [vmem:[%s610 + $0x28] sm:$0xf]
    %v622 = vld [vmem:[%s610 + $0x2c] sm:$0xf]
    %v623 = vld [vmem:[%s610 + $0x30] sm:$0xf]
    %v624 = vld [vmem:[%s610 + $0x34] sm:$0xf]
    %v625 = vld [vmem:[%s610 + $0x38] sm:$0xf]
    %v626 = vld [vmem:[%s610 + $0x3c] sm:$0xf]
    %v627 = vlaneseq
    %v628 = vshrl.u32 %v627, 7
    %v629 = vsub.s32 1, %v628
    %v630 = vrot.slane %v64, %v629
    %v647 = vunpack.c.l.b16 %v611
    %v648 = vunpack.c.l.b16 %v612
    %v649 = vunpack.c.l.b16 %v613
    %v650 = vunpack.c.l.b16 %v614
    %v651 = vunpack.c.l.b16 %v615
    %v652 = vunpack.c.l.b16 %v616
    %v653 = vunpack.c.l.b16 %v617
    %v654 = vunpack.c.l.b16 %v618
    %v655 = vunpack.c.l.b16 %v619
    %v656 = vunpack.c.l.b16 %v620
    %v657 = vunpack.c.l.b16 %v621
    %v658 = vunpack.c.l.b16 %v622
    %v659 = vunpack.c.l.b16 %v623
    %v660 = vunpack.c.l.b16 %v624
    %v661 = vunpack.c.l.b16 %v625
    %v662 = vunpack.c.l.b16 %v626
    %v663 = vpack.c.b16 %v648, %v647
    %v664 = vpack.c.b16 %v650, %v649
    %v665 = vpack.c.b16 %v652, %v651
    %v666 = vpack.c.b16 %v654, %v653
    %v667 = vpack.c.b16 %v656, %v655
    %v668 = vpack.c.b16 %v658, %v657
    %v669 = vpack.c.b16 %v660, %v659
    %v670 = vpack.c.b16 %v662, %v661
    %679 = vmatprep.subr.bf16.mxu0 0
    %680 = vmatpush1.bf16.msra.mxu0 %v670
    %681 = vmatprep.subr.bf16.mxu0 0
    %682 = vmatpush1.bf16.msra.mxu0 %v669
    %683 = vmatprep.subr.bf16.mxu0 0
    %684 = vmatpush1.bf16.msra.mxu0 %v668
    %685 = vmatprep.subr.bf16.mxu0 0
    %686 = vmatpush1.bf16.msra.mxu0 %v667
    %687 = vmatprep.subr.bf16.mxu0 0
    %688 = vmatpush1.bf16.msra.mxu0 %v666
    %689 = vmatprep.subr.bf16.mxu0 0
    %690 = vmatpush1.bf16.msra.mxu0 %v665
    %691 = vmatprep.subr.bf16.mxu0 0
    %692 = vmatpush1.bf16.msra.mxu0 %v664
    %693 = vmatprep.subr.bf16.mxu0 0
    %694 = vmatpush1.bf16.msra.mxu0 %v663
    %695 = vmatprep.subr.bf16.mxu0 0
    %696 = vmatpush2.bf16.msra.mxu0 0
    %697 = vmatprep.subr.bf16.mxu0 0
    %698 = vmatpush2.bf16.msra.mxu0 0
    %699 = vmatprep.subr.bf16.mxu0 0
    %700 = vmatpush2.bf16.msra.mxu0 0
    %701 = vmatprep.subr.bf16.mxu0 0
    %702 = vmatpush2.bf16.msra.mxu0 0
    %703 = vmatprep.subr.bf16.mxu0 0
    %704 = vmatpush2.bf16.msra.mxu0 0
    %705 = vmatprep.subr.bf16.mxu0 0
    %706 = vmatpush2.bf16.msra.mxu0 0
    %707 = vmatprep.subr.bf16.mxu0 0
    %708 = vmatpush2.bf16.msra.mxu0 0
    %709 = vmatprep.subr.bf16.mxu0 0
    %710 = vmatpush2.bf16.msra.mxu0 0
    %711 = vmatprep.mubr.bf16.mxu0 0
    %712 = vmatmul.mubr.bf16.gmra.mxu0 %v609
    %v713 = vpop.f32.mrf.mxu0
    %v714 = vadd.f32 %v630, %v713
    %v715 = vpop.f32.mrf.mxu0
    %v716 = vpop.f32.mrf.mxu0
    %v717 = vpop.f32.mrf.mxu0
    %718 = vdwg.mxu0
    %v719 = vmax.f32 %v714, 0.0
    %v720 = vpack.c.bf16 %v719, %v719
    %s721 = scalar_lea.vmem [#allocation4], 256
    %v722 = vld [vmem:[%s721] sm:$0xf]
    %v723 = vld [vmem:[%s721 + $0x4] sm:$0xf]
    %v724 = vld [vmem:[%s721 + $0x8] sm:$0xf]
    %v725 = vld [vmem:[%s721 + $0xc] sm:$0xf]
    %v726 = vld [vmem:[%s721 + $0x10] sm:$0xf]
    %v727 = vld [vmem:[%s721 + $0x14] sm:$0xf]
    %v728 = vld [vmem:[%s721 + $0x18] sm:$0xf]
    %v729 = vld [vmem:[%s721 + $0x1c] sm:$0xf]
    %v730 = vld [vmem:[%s721 + $0x20] sm:$0xf]
    %v731 = vld [vmem:[%s721 + $0x24] sm:$0xf]
    %v732 = vld [vmem:[%s721 + $0x28] sm:$0xf]
    %v733 = vld [vmem:[%s721 + $0x2c] sm:$0xf]
    %v734 = vld [vmem:[%s721 + $0x30] sm:$0xf]
    %v735 = vld [vmem:[%s721 + $0x34] sm:$0xf]
    %v736 = vld [vmem:[%s721 + $0x38] sm:$0xf]
    %v737 = vld [vmem:[%s721 + $0x3c] sm:$0xf]
    %v738 = vlaneseq
    %v739 = vshrl.u32 %v738, 7
    %v740 = vsub.s32 2, %v739
    %v741 = vrot.slane %v64, %v740
    %v758 = vunpack.c.l.b16 %v722
    %v759 = vunpack.c.l.b16 %v723
    %v760 = vunpack.c.l.b16 %v724
    %v761 = vunpack.c.l.b16 %v725
    %v762 = vunpack.c.l.b16 %v726
    %v763 = vunpack.c.l.b16 %v727
    %v764 = vunpack.c.l.b16 %v728
    %v765 = vunpack.c.l.b16 %v729
    %v766 = vunpack.c.l.b16 %v730
    %v767 = vunpack.c.l.b16 %v731
    %v768 = vunpack.c.l.b16 %v732
    %v769 = vunpack.c.l.b16 %v733
    %v770 = vunpack.c.l.b16 %v734
    %v771 = vunpack.c.l.b16 %v735
    %v772 = vunpack.c.l.b16 %v736
    %v773 = vunpack.c.l.b16 %v737
    %v774 = vpack.c.b16 %v759, %v758
    %v775 = vpack.c.b16 %v761, %v760
    %v776 = vpack.c.b16 %v763, %v762
    %v777 = vpack.c.b16 %v765, %v764
    %v778 = vpack.c.b16 %v767, %v766
    %v779 = vpack.c.b16 %v769, %v768
    %v780 = vpack.c.b16 %v771, %v770
    %v781 = vpack.c.b16 %v773, %v772
    %790 = vmatprep.subr.bf16.mxu0 0
    %791 = vmatpush1.bf16.msra.mxu0 %v781
    %792 = vmatprep.subr.bf16.mxu0 0
    %793 = vmatpush1.bf16.msra.mxu0 %v780
    %794 = vmatprep.subr.bf16.mxu0 0
    %795 = vmatpush1.bf16.msra.mxu0 %v779
    %796 = vmatprep.subr.bf16.mxu0 0
    %797 = vmatpush1.bf16.msra.mxu0 %v778
    %798 = vmatprep.subr.bf16.mxu0 0
    %799 = vmatpush1.bf16.msra.mxu0 %v777
    %800 = vmatprep.subr.bf16.mxu0 0
    %801 = vmatpush1.bf16.msra.mxu0 %v776
    %802 = vmatprep.subr.bf16.mxu0 0
    %803 = vmatpush1.bf16.msra.mxu0 %v775
    %804 = vmatprep.subr.bf16.mxu0 0
    %805 = vmatpush1.bf16.msra.mxu0 %v774
    %806 = vmatprep.subr.bf16.mxu0 0
    %807 = vmatpush2.bf16.msra.mxu0 0
    %808 = vmatprep.subr.bf16.mxu0 0
    %809 = vmatpush2.bf16.msra.mxu0 0
    %810 = vmatprep.subr.bf16.mxu0 0
    %811 = vmatpush2.bf16.msra.mxu0 0
    %812 = vmatprep.subr.bf16.mxu0 0
    %813 = vmatpush2.bf16.msra.mxu0 0
    %814 = vmatprep.subr.bf16.mxu0 0
    %815 = vmatpush2.bf16.msra.mxu0 0
    %816 = vmatprep.subr.bf16.mxu0 0
    %817 = vmatpush2.bf16.msra.mxu0 0
    %818 = vmatprep.subr.bf16.mxu0 0
    %819 = vmatpush2.bf16.msra.mxu0 0
    %820 = vmatprep.subr.bf16.mxu0 0
    %821 = vmatpush2.bf16.msra.mxu0 0
    %822 = vmatprep.mubr.bf16.mxu0 0
    %823 = vmatmul.mubr.bf16.gmra.mxu0 %v720
    %v824 = vpop.f32.mrf.mxu0
    %v825 = vadd.f32 %v741, %v824
    %v826 = vpop.f32.mrf.mxu0
    %v827 = vpop.f32.mrf.mxu0
    %v828 = vpop.f32.mrf.mxu0
    %829 = vdwg.mxu0
    %v830 = vmax.f32 %v825, 0.0
    %v831 = vpack.c.bf16 %v830, %v830
    %s832 = scalar_lea.vmem [#allocation4], 320
    %v833 = vld [vmem:[%s832] sm:$0xf]
    %v834 = vld [vmem:[%s832 + $0x4] sm:$0xf]
    %v835 = vld [vmem:[%s832 + $0x8] sm:$0xf]
    %v836 = vld [vmem:[%s832 + $0xc] sm:$0xf]
    %v837 = vld [vmem:[%s832 + $0x10] sm:$0xf]
    %v838 = vld [vmem:[%s832 + $0x14] sm:$0xf]
    %v839 = vld [vmem:[%s832 + $0x18] sm:$0xf]
    %v840 = vld [vmem:[%s832 + $0x1c] sm:$0xf]
    %v841 = vld [vmem:[%s832 + $0x20] sm:$0xf]
    %v842 = vld [vmem:[%s832 + $0x24] sm:$0xf]
    %v843 = vld [vmem:[%s832 + $0x28] sm:$0xf]
    %v844 = vld [vmem:[%s832 + $0x2c] sm:$0xf]
    %v845 = vld [vmem:[%s832 + $0x30] sm:$0xf]
    %v846 = vld [vmem:[%s832 + $0x34] sm:$0xf]
    %v847 = vld [vmem:[%s832 + $0x38] sm:$0xf]
    %v848 = vld [vmem:[%s832 + $0x3c] sm:$0xf]
    %v849 = vlaneseq
    %v850 = vshrl.u32 %v849, 7
    %v851 = vsub.s32 3, %v850
    %v852 = vrot.slane %v64, %v851
    %v869 = vunpack.c.l.b16 %v833
    %v870 = vunpack.c.l.b16 %v834
    %v871 = vunpack.c.l.b16 %v835
    %v872 = vunpack.c.l.b16 %v836
    %v873 = vunpack.c.l.b16 %v837
    %v874 = vunpack.c.l.b16 %v838
    %v875 = vunpack.c.l.b16 %v839
    %v876 = vunpack.c.l.b16 %v840
    %v877 = vunpack.c.l.b16 %v841
    %v878 = vunpack.c.l.b16 %v842
    %v879 = vunpack.c.l.b16 %v843
    %v880 = vunpack.c.l.b16 %v844
    %v881 = vunpack.c.l.b16 %v845
    %v882 = vunpack.c.l.b16 %v846
    %v883 = vunpack.c.l.b16 %v847
    %v884 = vunpack.c.l.b16 %v848
    %v885 = vpack.c.b16 %v870, %v869
    %v886 = vpack.c.b16 %v872, %v871
    %v887 = vpack.c.b16 %v874, %v873
    %v888 = vpack.c.b16 %v876, %v875
    %v889 = vpack.c.b16 %v878, %v877
    %v890 = vpack.c.b16 %v880, %v879
    %v891 = vpack.c.b16 %v882, %v881
    %v892 = vpack.c.b16 %v884, %v883
    %901 = vmatprep.subr.bf16.mxu0 0
    %902 = vmatpush1.bf16.msra.mxu0 %v892
    %903 = vmatprep.subr.bf16.mxu0 0
    %904 = vmatpush1.bf16.msra.mxu0 %v891
    %905 = vmatprep.subr.bf16.mxu0 0
    %906 = vmatpush1.bf16.msra.mxu0 %v890
    %907 = vmatprep.subr.bf16.mxu0 0
    %908 = vmatpush1.bf16.msra.mxu0 %v889
    %909 = vmatprep.subr.bf16.mxu0 0
    %910 = vmatpush1.bf16.msra.mxu0 %v888
    %911 = vmatprep.subr.bf16.mxu0 0
    %912 = vmatpush1.bf16.msra.mxu0 %v887
    %913 = vmatprep.subr.bf16.mxu0 0
    %914 = vmatpush1.bf16.msra.mxu0 %v886
    %915 = vmatprep.subr.bf16.mxu0 0
    %916 = vmatpush1.bf16.msra.mxu0 %v885
    %917 = vmatprep.subr.bf16.mxu0 0
    %918 = vmatpush2.bf16.msra.mxu0 0
    %919 = vmatprep.subr.bf16.mxu0 0
    %920 = vmatpush2.bf16.msra.mxu0 0
    %921 = vmatprep.subr.bf16.mxu0 0
    %922 = vmatpush2.bf16.msra.mxu0 0
    %923 = vmatprep.subr.bf16.mxu0 0
    %924 = vmatpush2.bf16.msra.mxu0 0
    %925 = vmatprep.subr.bf16.mxu0 0
    %926 = vmatpush2.bf16.msra.mxu0 0
    %927 = vmatprep.subr.bf16.mxu0 0
    %928 = vmatpush2.bf16.msra.mxu0 0
    %929 = vmatprep.subr.bf16.mxu0 0
    %930 = vmatpush2.bf16.msra.mxu0 0
    %931 = vmatprep.subr.bf16.mxu0 0
    %932 = vmatpush2.bf16.msra.mxu0 0
    %933 = vmatprep.mubr.bf16.mxu0 0
    %934 = vmatmul.mubr.bf16.gmra.mxu0 %v831
    %v935 = vpop.f32.mrf.mxu0
    %v936 = vadd.f32 %v852, %v935
    %v937 = vpop.f32.mrf.mxu0
    %v938 = vpop.f32.mrf.mxu0
    %v939 = vpop.f32.mrf.mxu0
    %940 = vdwg.mxu0
    %v941 = vmax.f32 %v936, 0.0
    %v942 = vpack.c.bf16 %v941, %v941
    %943 = vmatprep.subr.bf16.mxu0 0
    %944 = vmatpush1.bf16.msra.mxu0 %v559
    %945 = vmatprep.subr.bf16.mxu0 0
    %946 = vmatpush1.bf16.msra.mxu0 %v558
    %947 = vmatprep.subr.bf16.mxu0 0
    %948 = vmatpush1.bf16.msra.mxu0 %v557
    %949 = vmatprep.subr.bf16.mxu0 0
    %950 = vmatpush1.bf16.msra.mxu0 %v556
    %951 = vmatprep.subr.bf16.mxu0 0
    %952 = vmatpush1.bf16.msra.mxu0 %v555
    %953 = vmatprep.subr.bf16.mxu0 0
    %954 = vmatpush1.bf16.msra.mxu0 %v554
    %955 = vmatprep.subr.bf16.mxu0 0
    %956 = vmatpush1.bf16.msra.mxu0 %v553
    %957 = vmatprep.subr.bf16.mxu0 0
    %958 = vmatpush1.bf16.msra.mxu0 %v552
    %959 = vmatprep.subr.bf16.mxu0 0
    %960 = vmatpush2.bf16.msra.mxu0 0
    %961 = vmatprep.subr.bf16.mxu0 0
    %962 = vmatpush2.bf16.msra.mxu0 0
    %963 = vmatprep.subr.bf16.mxu0 0
    %964 = vmatpush2.bf16.msra.mxu0 0
    %965 = vmatprep.subr.bf16.mxu0 0
    %966 = vmatpush2.bf16.msra.mxu0 0
    %967 = vmatprep.subr.bf16.mxu0 0
    %968 = vmatpush2.bf16.msra.mxu0 0
    %969 = vmatprep.subr.bf16.mxu0 0
    %970 = vmatpush2.bf16.msra.mxu0 0
    %971 = vmatprep.subr.bf16.mxu0 0
    %972 = vmatpush2.bf16.msra.mxu0 0
    %973 = vmatprep.subr.bf16.mxu0 0
    %974 = vmatpush2.bf16.msra.mxu0 0
    %975 = vmatprep.mubr.bf16.mxu0 0
    %976 = vmatmul.mubr.bf16.gmra.mxu0 %v942
    %v977 = vpop.f32.mrf.mxu0
    %v978 = vadd.f32 %v503, %v977
    %v979 = vpop.f32.mrf.mxu0
    %v980 = vpop.f32.mrf.mxu0
    %v981 = vpop.f32.mrf.mxu0
    %982 = vdwg.mxu0
    %v983 = vmax.f32 %v978, 0.0
    %v984 = vpack.c.bf16 %v983, %v983
    %985 = vmatprep.subr.bf16.mxu0 0
    %986 = vmatpush1.bf16.msra.mxu0 %v670
    %987 = vmatprep.subr.bf16.mxu0 0
    %988 = vmatpush1.bf16.msra.mxu0 %v669
    %989 = vmatprep.subr.bf16.mxu0 0
    %990 = vmatpush1.bf16.msra.mxu0 %v668
    %991 = vmatprep.subr.bf16.mxu0 0
    %992 = vmatpush1.bf16.msra.mxu0 %v667
    %993 = vmatprep.subr.bf16.mxu0 0
    %994 = vmatpush1.bf16.msra.mxu0 %v666
    %995 = vmatprep.subr.bf16.mxu0 0
    %996 = vmatpush1.bf16.msra.mxu0 %v665
    %997 = vmatprep.subr.bf16.mxu0 0
    %998 = vmatpush1.bf16.msra.mxu0 %v664
    %999 = vmatprep.subr.bf16.mxu0 0
    %1000 = vmatpush1.bf16.msra.mxu0 %v663
    %1001 = vmatprep.subr.bf16.mxu0 0
    %1002 = vmatpush2.bf16.msra.mxu0 0
    %1003 = vmatprep.subr.bf16.mxu0 0
    %1004 = vmatpush2.bf16.msra.mxu0 0
    %1005 = vmatprep.subr.bf16.mxu0 0
    %1006 = vmatpush2.bf16.msra.mxu0 0
    %1007 = vmatprep.subr.bf16.mxu0 0
    %1008 = vmatpush2.bf16.msra.mxu0 0
    %1009 = vmatprep.subr.bf16.mxu0 0
    %1010 = vmatpush2.bf16.msra.mxu0 0
    %1011 = vmatprep.subr.bf16.mxu0 0
    %1012 = vmatpush2.bf16.msra.mxu0 0
    %1013 = vmatprep.subr.bf16.mxu0 0
    %1014 = vmatpush2.bf16.msra.mxu0 0
    %1015 = vmatprep.subr.bf16.mxu0 0
    %1016 = vmatpush2.bf16.msra.mxu0 0
    %1017 = vmatprep.mubr.bf16.mxu0 0
    %1018 = vmatmul.mubr.bf16.gmra.mxu0 %v984
    %v1019 = vpop.f32.mrf.mxu0
    %v1020 = vadd.f32 %v630, %v1019
    %v1021 = vpop.f32.mrf.mxu0
    %v1022 = vpop.f32.mrf.mxu0
    %v1023 = vpop.f32.mrf.mxu0
    %1024 = vdwg.mxu0
    %v1025 = vmax.f32 %v1020, 0.0
    %v1026 = vpack.c.bf16 %v1025, %v1025
    %1027 = vmatprep.subr.bf16.mxu0 0
    %1028 = vmatpush1.bf16.msra.mxu0 %v781
    %1029 = vmatprep.subr.bf16.mxu0 0
    %1030 = vmatpush1.bf16.msra.mxu0 %v780
    %1031 = vmatprep.subr.bf16.mxu0 0
    %1032 = vmatpush1.bf16.msra.mxu0 %v779
    %1033 = vmatprep.subr.bf16.mxu0 0
    %1034 = vmatpush1.bf16.msra.mxu0 %v778
    %1035 = vmatprep.subr.bf16.mxu0 0
    %1036 = vmatpush1.bf16.msra.mxu0 %v777
    %1037 = vmatprep.subr.bf16.mxu0 0
    %1038 = vmatpush1.bf16.msra.mxu0 %v776
    %1039 = vmatprep.subr.bf16.mxu0 0
    %1040 = vmatpush1.bf16.msra.mxu0 %v775
    %1041 = vmatprep.subr.bf16.mxu0 0
    %1042 = vmatpush1.bf16.msra.mxu0 %v774
    %1043 = vmatprep.subr.bf16.mxu0 0
    %1044 = vmatpush2.bf16.msra.mxu0 0
    %1045 = vmatprep.subr.bf16.mxu0 0
    %1046 = vmatpush2.bf16.msra.mxu0 0
    %1047 = vmatprep.subr.bf16.mxu0 0
    %1048 = vmatpush2.bf16.msra.mxu0 0
    %1049 = vmatprep.subr.bf16.mxu0 0
    %1050 = vmatpush2.bf16.msra.mxu0 0
    %1051 = vmatprep.subr.bf16.mxu0 0
    %1052 = vmatpush2.bf16.msra.mxu0 0
    %1053 = vmatprep.subr.bf16.mxu0 0
    %1054 = vmatpush2.bf16.msra.mxu0 0
    %1055 = vmatprep.subr.bf16.mxu0 0
    %1056 = vmatpush2.bf16.msra.mxu0 0
    %1057 = vmatprep.subr.bf16.mxu0 0
    %1058 = vmatpush2.bf16.msra.mxu0 0
    %1059 = vmatprep.mubr.bf16.mxu0 0
    %1060 = vmatmul.mubr.bf16.gmra.mxu0 %v1026
    %v1061 = vpop.f32.mrf.mxu0
    %v1062 = vadd.f32 %v741, %v1061
    %v1063 = vpop.f32.mrf.mxu0
    %v1064 = vpop.f32.mrf.mxu0
    %v1065 = vpop.f32.mrf.mxu0
    %1066 = vdwg.mxu0
    %v1067 = vmax.f32 %v1062, 0.0
    %v1068 = vpack.c.bf16 %v1067, %v1067
    %1069 = vmatprep.subr.bf16.mxu0 0
    %1070 = vmatpush1.bf16.msra.mxu0 %v892
    %1071 = vmatprep.subr.bf16.mxu0 0
    %1072 = vmatpush1.bf16.msra.mxu0 %v891
    %1073 = vmatprep.subr.bf16.mxu0 0
    %1074 = vmatpush1.bf16.msra.mxu0 %v890
    %1075 = vmatprep.subr.bf16.mxu0 0
    %1076 = vmatpush1.bf16.msra.mxu0 %v889
    %1077 = vmatprep.subr.bf16.mxu0 0
    %1078 = vmatpush1.bf16.msra.mxu0 %v888
    %1079 = vmatprep.subr.bf16.mxu0 0
    %1080 = vmatpush1.bf16.msra.mxu0 %v887
    %1081 = vmatprep.subr.bf16.mxu0 0
    %1082 = vmatpush1.bf16.msra.mxu0 %v886
    %1083 = vmatprep.subr.bf16.mxu0 0
    %1084 = vmatpush1.bf16.msra.mxu0 %v885
    %1085 = vmatprep.subr.bf16.mxu0 0
    %1086 = vmatpush2.bf16.msra.mxu0 0
    %1087 = vmatprep.subr.bf16.mxu0 0
    %1088 = vmatpush2.bf16.msra.mxu0 0
    %1089 = vmatprep.subr.bf16.mxu0 0
    %1090 = vmatpush2.bf16.msra.mxu0 0
    %1091 = vmatprep.subr.bf16.mxu0 0
    %1092 = vmatpush2.bf16.msra.mxu0 0
    %1093 = vmatprep.subr.bf16.mxu0 0
    %1094 = vmatpush2.bf16.msra.mxu0 0
    %1095 = vmatprep.subr.bf16.mxu0 0
    %1096 = vmatpush2.bf16.msra.mxu0 0
    %1097 = vmatprep.subr.bf16.mxu0 0
    %1098 = vmatpush2.bf16.msra.mxu0 0
    %1099 = vmatprep.subr.bf16.mxu0 0
    %1100 = vmatpush2.bf16.msra.mxu0 0
    %1101 = vmatprep.mubr.bf16.mxu0 0
    %1102 = vmatmul.mubr.bf16.gmra.mxu0 %v1068
    %v1103 = vpop.f32.mrf.mxu0
    %v1104 = vadd.f32 %v852, %v1103
    %v1105 = vpop.f32.mrf.mxu0
    %v1106 = vpop.f32.mrf.mxu0
    %v1107 = vpop.f32.mrf.mxu0
    %1108 = vdwg.mxu0
    %v1109 = vmax.f32 %v1104, 0.0
    %v1110 = vlaneseq
    %v1111 = vshrl.u32 %v1110, 7
    %v1112 = vsub.s32 4, %v1111
    %v1113 = vrot.slane %v64, %v1112
    %v1114 = vmul.f32 %v1109, %v1113
    %v1115 = vlaneseq
    %v1116 = vshrl.u32 %v1115, 7
    %v1117 = vsub.s32 5, %v1116
    %v1118 = vrot.slane %v64, %v1117
    %v1119 = vadd.f32 %v1114, %v1118
    %vm1120 = vcmask 1043456
    %v1121 = vsel %vm1120, %v1119, 0.0
    %1122 = vadd.xlane.f32.xlu0 %v1121
    %v1123 = vpop.xlane.xlu0 %1122
    %vm1124 = vcmask 3072
    %1125 = vst.msk [vmem:[%s3] sm:$0xf] %vm1124, %v1123
    %v1126 = vxor.u32 %v1123, 2147483648
    %v1127 = vmul.f32 %v1126, 1.442695
    %v1128 = vpow.pop %v1127
    %v1129 = vadd.f32 %v1128, 1.0
    %v1130 = vrcp.pop %v1129
    %v1131 = vmul.f32 1.0, %v1130
    %vm1132 = vcmask 11272
    %1133 = vst.msk [vmem:[%s3] sm:$0xf] %vm1132, %v1131
    // Predicated region
    $region26: #{tpu_custom_call.1} parent=1 // pred_check
      _
    $region27: #{tpu_custom_call.1} parent=1 // pred_check_branch
      %1135 = sbr.rel (0) target = $region29
    $region28: #{tpu_custom_call.1} parent=1 // pred_region
      _
    $region29: #{tpu_custom_call.1} parent=1 // pred_fallthru
      _
    // Predicated region
    $region30: #{tpu_custom_call.1} parent=1 // pred_check
      _
    $region31: #{tpu_custom_call.1} parent=1 // pred_check_branch
      %1137 = sbr.rel (0) target = $region33
    $region32: #{tpu_custom_call.1} parent=1 // pred_region
      _
    $region33: #{tpu_custom_call.1} parent=1 // pred_fallthru
      _
    %1138 = vsyncpa [#allocation3], 1
    %1139 = vsyncpa [#allocation5], 1

</llo_original>
